<compile_context>
chip_gen: v7x
topology: tpu7x:2x2x1
jax: 0.10.0
libtpu: 0.0.40
codegen_flags: <defaults>
</compile_context>

<pallas_src>
import functools

import jax
import jax.numpy as jnp
import numpy as np
from jax import lax
from jax.experimental import pallas as pl
from jax.experimental.pallas import tpu as pltpu


def _sepconv_kernel(x_ref, dw_ref, pw_ref, bias_ref, out_ref, *,
                    H, W, Cin, Cout, K, dil, mxu_bf16):
    # x_ref:   (Nb, Hp_pad, WpC_pad)  zero-padded, channel-interleaved, lane-dense
    # dw_ref:  (K*K, H, W*Cin)        BN-folded depthwise taps, pre-broadcast over H
    # pw_ref:  (W*Cin, W*Cout)        BN-folded block-diagonal pointwise weight
    # bias_ref:(1, W*Cout)            fused bias (bn_point(pointwise(b1)))
    # out_ref: (Nb, H, W*Cout)
    WC = W * Cin
    Nb = out_ref.shape[0]

    # ReLU on the full lane-dense padded block (relu_first=True; padding is
    # zero and ReLU(0)=0, so padding before the ReLU is equivalent).
    x = jnp.maximum(x_ref[...].astype(jnp.float32), 0.0)

    # Hoisted kw lane shifts: K column-shifted copies (lane offsets kw*dil*Cin).
    cols = [x[:, :, kw * dil * Cin: kw * dil * Cin + WC] for kw in range(K)]

    # Depthwise KxK (dilated).  Accumulator initialised from tap 0; the tap
    # loop only slices sublanes (row offset kh*dil).  Weight slabs are plain
    # loads of the host-pre-broadcast (H, WC) rows (no per-tap VPU broadcast).
    acc = cols[0][:, 0:H, :] * dw_ref[0].astype(jnp.float32)
    for t in range(1, K * K):
        kh, kw = divmod(t, K)
        tap = cols[kw][:, kh * dil: kh * dil + H, :]
        acc = acc + tap * dw_ref[t].astype(jnp.float32)

    # Pointwise 1x1 conv as a single MXU matmul with the batch folded into M.
    m = acc.reshape(Nb * H, WC)            # layout-preserving (H % 8 == 0)
    if mxu_bf16:
        m = m.astype(jnp.bfloat16)
    y = jnp.dot(m, pw_ref[...], preferred_element_type=jnp.float32)
    y = y + bias_ref[...]
    out_ref[...] = y.reshape(Nb, H, W * Cout).astype(out_ref.dtype)  # lane-dense store


@functools.partial(jax.jit,
                   static_argnames=("dilation", "eps", "batch_block", "mxu_bf16"))
def separable_conv2d_pallas(x_nchw, dw_w, pw_w, bn1, bn2, *, dilation=1,
                            eps=1e-5, batch_block=None, mxu_bf16=True):
    """x_nchw: (N, Cin, H, W). dw_w: (Cin,1,K,K). pw_w: (Cout,Cin,1,1).
    bn1/bn2: dicts with gamma, beta, mean, var (eval-mode running stats).
    Returns (N, Cout, H, W)."""
    N, Cin, H, W = x_nchw.shape
    Cout = pw_w.shape[0]
    K = dw_w.shape[-1]
    d = dilation
    WC = W * Cin
    WCout = W * Cout
    Hp = H + 2 * d
    Hp_pad = ((Hp + 7) // 8) * 8               # sublane-dense padded rows
    WpC = (W + 2 * d) * Cin
    WpC_pad = ((WpC + 127) // 128) * 128       # lane-dense padded input width
    f32 = jnp.float32

    # --- fuse eval-mode BatchNorm into per-channel scale / shift -------------
    s1 = (bn1["gamma"] / jnp.sqrt(bn1["var"] + eps)).astype(f32)   # (Cin,)
    b1 = (bn1["beta"] - bn1["mean"] * s1).astype(f32)              # (Cin,)
    s2 = (bn2["gamma"] / jnp.sqrt(bn2["var"] + eps)).astype(f32)   # (Cout,)
    b2 = (bn2["beta"] - bn2["mean"] * s2).astype(f32)              # (Cout,)

    # fold bn_depth into depthwise taps; tile across W (lane axis) and
    # pre-broadcast across H (sublanes) so the kernel's weight use is a load.
    dw_flat = dw_w.reshape(Cin, K * K).astype(f32) * s1[:, None]       # (Cin,K*K)
    dw_rows = jnp.tile(jnp.transpose(dw_flat, (1, 0)), (1, W))         # (K*K,W*Cin)
    dw_bcast = jnp.broadcast_to(dw_rows[:, None, :], (K * K, H, WC))   # (K*K,H,W*Cin)

    # fold bn_point into the pointwise weight; block-diagonal so the 1x1 conv
    # over the channel-interleaved layout is one matmul.
    pw2d = jnp.transpose(pw_w.reshape(Cout, Cin), (1, 0)).astype(f32)  # (Cin,Cout)
    pw_scaled = pw2d * s2[None, :]
    pw_blk = jnp.kron(jnp.eye(W, dtype=f32), pw_scaled)                # (W*Cin,W*Cout)
    if mxu_bf16:
        pw_blk = pw_blk.astype(jnp.bfloat16)

    bias_row = jnp.tile(b1 @ pw_scaled + b2, W).reshape(1, WCout)      # (1,W*Cout)

    # --- batch blocking -------------------------------------------------------
    nb = batch_block if batch_block is not None else min(N, 8)
    nb = max(1, min(nb, N))
    n_blocks = (N + nb - 1) // nb
    N_pad = n_blocks * nb

    # NCHW -> channel-interleaved (N, H, W*Cin); zero-pad rows/lanes so the
    # block is (sublane, lane)-dense.  Under jit these fuse into one pass.
    x_il = jnp.transpose(x_nchw, (0, 2, 3, 1)).reshape(N, H, WC)
    xpad = jnp.pad(x_il, ((0, N_pad - N),
                          (d, Hp_pad - H - d),
                          (d * Cin, WpC_pad - WC - d * Cin)))

    kernel = functools.partial(_sepconv_kernel, H=H, W=W, Cin=Cin, Cout=Cout,
                               K=K, dil=d, mxu_bf16=mxu_bf16)

    pw_bytes = 2 if mxu_bf16 else 4
    flops = 2 * N * H * W * Cin * (K * K + Cout)          # true math flops
    bytes_accessed = (4 * N_pad * Hp_pad * WpC_pad         # input
                      + 4 * K * K * H * WC                 # depthwise taps
                      + pw_bytes * WC * WCout + 4 * WCout  # pointwise + bias
                      + 4 * N_pad * H * WCout)             # output

    out_il = pl.pallas_call(
        kernel,
        out_shape=jax.ShapeDtypeStruct((N_pad, H, WCout), jnp.float32),
        grid=(n_blocks,),
        in_specs=[
            pl.BlockSpec((nb, Hp_pad, WpC_pad), lambda n: (n, 0, 0)),
            pl.BlockSpec((K * K, H, WC), lambda n: (0, 0, 0)),
            pl.BlockSpec((WC, WCout), lambda n: (0, 0)),
            pl.BlockSpec((1, WCout), lambda n: (0, 0)),
        ],
        out_specs=pl.BlockSpec((nb, H, WCout), lambda n: (n, 0, 0)),
        compiler_params=pltpu.CompilerParams(
            dimension_semantics=("parallel",)),
        cost_estimate=pl.CostEstimate(flops=flops, transcendentals=0,
                                      bytes_accessed=bytes_accessed),
    )(xpad, dw_bcast, pw_blk, bias_row)

    # (N, H, W*Cout) -> NCHW
    out_il = out_il[:N]
    return jnp.transpose(out_il.reshape(N, H, W, Cout), (0, 3, 1, 2))


def separable_conv2d_ref(x_nchw, dw_w, pw_w, bn1, bn2, *, dilation=1, eps=1e-5):
    """Pure-JAX reference matching PyTorch semantics (eval-mode BN)."""
    Cin = x_nchw.shape[1]
    d = dilation
    x = jnp.maximum(x_nchw, 0.0)
    y = lax.conv_general_dilated(
        x, dw_w, window_strides=(1, 1), padding=[(d, d), (d, d)],
        rhs_dilation=(d, d), feature_group_count=Cin,
        dimension_numbers=("NCHW", "OIHW", "NCHW"))
    y = ((y - bn1["mean"][None, :, None, None])
         / jnp.sqrt(bn1["var"] + eps)[None, :, None, None]
         * bn1["gamma"][None, :, None, None] + bn1["beta"][None, :, None, None])
    y = lax.conv_general_dilated(
        y, pw_w, window_strides=(1, 1), padding=[(0, 0), (0, 0)],
        dimension_numbers=("NCHW", "OIHW", "NCHW"))
    y = ((y - bn2["mean"][None, :, None, None])
         / jnp.sqrt(bn2["var"] + eps)[None, :, None, None]
         * bn2["gamma"][None, :, None, None] + bn2["beta"][None, :, None, None])
    return y


if __name__ == "__main__":
    # small shapes consistent with the module: N=2, inplanes=4, planes=8, H=W=16
    N, Cin, Cout, H, W = 2, 4, 8, 16, 16
    K, dilation = 3, 1

    key = jax.random.PRNGKey(0)
    ks = jax.random.split(key, 11)

    x = jax.random.normal(ks[0], (N, Cin, H, W), jnp.float32)

    # deterministic synthetic parameters (shapes from the module __init__)
    dw_w = jax.random.normal(ks[1], (Cin, 1, K, K), jnp.float32) * 0.2     # depthwise
    pw_w = jax.random.normal(ks[2], (Cout, Cin, 1, 1), jnp.float32) * 0.2  # pointwise
    bn1 = dict(
        gamma=1.0 + 0.1 * jax.random.normal(ks[3], (Cin,), jnp.float32),
        beta=0.1 * jax.random.normal(ks[4], (Cin,), jnp.float32),
        mean=0.1 * jax.random.normal(ks[5], (Cin,), jnp.float32),
        var=1.0 + 0.1 * jax.random.uniform(ks[6], (Cin,), jnp.float32),
    )
    bn2 = dict(
        gamma=1.0 + 0.1 * jax.random.normal(ks[7], (Cout,), jnp.float32),
        beta=0.1 * jax.random.normal(ks[8], (Cout,), jnp.float32),
        mean=0.1 * jax.random.normal(ks[9], (Cout,), jnp.float32),
        var=1.0 + 0.1 * jax.random.uniform(ks[10], (Cout,), jnp.float32),
    )

    ref = jax.block_until_ready(
        separable_conv2d_ref(x, dw_w, pw_w, bn1, bn2, dilation=dilation))

    # exact-layout check: f32 MXU operands, tight tolerance
    out_f32 = jax.block_until_ready(
        separable_conv2d_pallas(x, dw_w, pw_w, bn1, bn2, dilation=dilation,
                                mxu_bf16=False))
    assert out_f32.shape == (N, Cout, H, W), out_f32.shape
    np.testing.assert_allclose(np.asarray(out_f32), np.asarray(ref),
                               rtol=1e-4, atol=1e-4)

    # default fast path: bf16 MXU operands (single MXU pass on v6e/v7x);
    # tolerance widened accordingly (bf16 operand rounding, f32 accumulation).
    out = jax.block_until_ready(
        separable_conv2d_pallas(x, dw_w, pw_w, bn1, bn2, dilation=dilation))
    assert out.shape == (N, Cout, H, W), out.shape
    np.testing.assert_allclose(np.asarray(out), np.asarray(ref),
                               rtol=2e-2, atol=2e-2)

    print("KERNEL_OK")
</pallas_src>

<mosaic_0001>
module attributes {stable_mosaic.version = 11 : i64} {
  func.func @_sepconv_kernel(%arg0: i32, %arg1: memref<2x24x128xf32, #tpu.memory_space<vmem>>, %arg2: memref<9x16x64xf32, #tpu.memory_space<vmem>>, %arg3: memref<64x128xf32, #tpu.memory_space<vmem>>, %arg4: memref<1x128xf32, #tpu.memory_space<vmem>>, %arg5: memref<2x16x128xf32, #tpu.memory_space<vmem>>) attributes {dimension_semantics = [#tpu.dimension_semantics<parallel>], iteration_bounds = array<i64: 1>, scalar_prefetch = 0 : i64, scratch_operands = 0 : i64, tpu.core_type = #tpu.core_type<tc>, window_params = [{transform_indices = @transform_0, window_bounds = array<i64: 2, 24, 128>}, {pipeline_mode = #tpu.pipeline_mode<synchronous>, transform_indices = @transform_1, window_bounds = array<i64: 9, 16, 64>}, {pipeline_mode = #tpu.pipeline_mode<synchronous>, transform_indices = @transform_2, window_bounds = array<i64: 64, 128>}, {pipeline_mode = #tpu.pipeline_mode<synchronous>, transform_indices = @transform_3, window_bounds = array<i64: 1, 128>}, {transform_indices = @transform_4, window_bounds = array<i64: 2, 16, 128>}]} {
    %c0 = arith.constant 0 : index
    %c0_0 = arith.constant 0 : index
    %c0_1 = arith.constant 0 : index
    %0 = vector.load %arg1[%c0, %c0_0, %c0_1] : memref<2x24x128xf32, #tpu.memory_space<vmem>>, vector<2x24x128xf32>
    %cst = arith.constant 0.000000e+00 : f32
    %1 = vector.broadcast %cst : f32 to vector<2x24x128xf32>
    %2 = arith.maximumf %0, %1 : vector<2x24x128xf32>
    %3 = vector.extract_strided_slice %2 {offsets = [0, 0, 0], sizes = [2, 24, 64], strides = [1, 1, 1]} : vector<2x24x128xf32> to vector<2x24x64xf32>
    %4 = vector.extract_strided_slice %2 {offsets = [0, 0, 4], sizes = [2, 24, 64], strides = [1, 1, 1]} : vector<2x24x128xf32> to vector<2x24x64xf32>
    %5 = vector.extract_strided_slice %2 {offsets = [0, 0, 8], sizes = [2, 24, 64], strides = [1, 1, 1]} : vector<2x24x128xf32> to vector<2x24x64xf32>
    %6 = vector.extract_strided_slice %3 {offsets = [0, 0, 0], sizes = [2, 16, 64], strides = [1, 1, 1]} : vector<2x24x64xf32> to vector<2x16x64xf32>
    %c0_2 = arith.constant 0 : index
    %c0_3 = arith.constant 0 : index
    %c0_4 = arith.constant 0 : index
    %7 = vector.load %arg2[%c0_2, %c0_3, %c0_4] : memref<9x16x64xf32, #tpu.memory_space<vmem>>, vector<1x16x64xf32>
    %8 = vector.shape_cast %7 : vector<1x16x64xf32> to vector<16x64xf32>
    %9 = vector.shape_cast %8 : vector<16x64xf32> to vector<1x16x64xf32>
    %10 = vector.broadcast %9 : vector<1x16x64xf32> to vector<2x16x64xf32>
    %11 = arith.mulf %6, %10 : vector<2x16x64xf32>
    %12 = vector.extract_strided_slice %4 {offsets = [0, 0, 0], sizes = [2, 16, 64], strides = [1, 1, 1]} : vector<2x24x64xf32> to vector<2x16x64xf32>
    %c1 = arith.constant 1 : index
    %c0_5 = arith.constant 0 : index
    %c0_6 = arith.constant 0 : index
    %13 = vector.load %arg2[%c1, %c0_5, %c0_6] : memref<9x16x64xf32, #tpu.memory_space<vmem>>, vector<1x16x64xf32>
    %14 = vector.shape_cast %13 : vector<1x16x64xf32> to vector<16x64xf32>
    %15 = vector.shape_cast %14 : vector<16x64xf32> to vector<1x16x64xf32>
    %16 = vector.broadcast %15 : vector<1x16x64xf32> to vector<2x16x64xf32>
    %17 = arith.mulf %12, %16 : vector<2x16x64xf32>
    %18 = arith.addf %11, %17 : vector<2x16x64xf32>
    %19 = vector.extract_strided_slice %5 {offsets = [0, 0, 0], sizes = [2, 16, 64], strides = [1, 1, 1]} : vector<2x24x64xf32> to vector<2x16x64xf32>
    %c2 = arith.constant 2 : index
    %c0_7 = arith.constant 0 : index
    %c0_8 = arith.constant 0 : index
    %20 = vector.load %arg2[%c2, %c0_7, %c0_8] : memref<9x16x64xf32, #tpu.memory_space<vmem>>, vector<1x16x64xf32>
    %21 = vector.shape_cast %20 : vector<1x16x64xf32> to vector<16x64xf32>
    %22 = vector.shape_cast %21 : vector<16x64xf32> to vector<1x16x64xf32>
    %23 = vector.broadcast %22 : vector<1x16x64xf32> to vector<2x16x64xf32>
    %24 = arith.mulf %19, %23 : vector<2x16x64xf32>
    %25 = arith.addf %18, %24 : vector<2x16x64xf32>
    %26 = vector.extract_strided_slice %3 {offsets = [0, 1, 0], sizes = [2, 16, 64], strides = [1, 1, 1]} : vector<2x24x64xf32> to vector<2x16x64xf32>
    %c3 = arith.constant 3 : index
    %c0_9 = arith.constant 0 : index
    %c0_10 = arith.constant 0 : index
    %27 = vector.load %arg2[%c3, %c0_9, %c0_10] : memref<9x16x64xf32, #tpu.memory_space<vmem>>, vector<1x16x64xf32>
    %28 = vector.shape_cast %27 : vector<1x16x64xf32> to vector<16x64xf32>
    %29 = vector.shape_cast %28 : vector<16x64xf32> to vector<1x16x64xf32>
    %30 = vector.broadcast %29 : vector<1x16x64xf32> to vector<2x16x64xf32>
    %31 = arith.mulf %26, %30 : vector<2x16x64xf32>
    %32 = arith.addf %25, %31 : vector<2x16x64xf32>
    %33 = vector.extract_strided_slice %4 {offsets = [0, 1, 0], sizes = [2, 16, 64], strides = [1, 1, 1]} : vector<2x24x64xf32> to vector<2x16x64xf32>
    %c4 = arith.constant 4 : index
    %c0_11 = arith.constant 0 : index
    %c0_12 = arith.constant 0 : index
    %34 = vector.load %arg2[%c4, %c0_11, %c0_12] : memref<9x16x64xf32, #tpu.memory_space<vmem>>, vector<1x16x64xf32>
    %35 = vector.shape_cast %34 : vector<1x16x64xf32> to vector<16x64xf32>
    %36 = vector.shape_cast %35 : vector<16x64xf32> to vector<1x16x64xf32>
    %37 = vector.broadcast %36 : vector<1x16x64xf32> to vector<2x16x64xf32>
    %38 = arith.mulf %33, %37 : vector<2x16x64xf32>
    %39 = arith.addf %32, %38 : vector<2x16x64xf32>
    %40 = vector.extract_strided_slice %5 {offsets = [0, 1, 0], sizes = [2, 16, 64], strides = [1, 1, 1]} : vector<2x24x64xf32> to vector<2x16x64xf32>
    %c5 = arith.constant 5 : index
    %c0_13 = arith.constant 0 : index
    %c0_14 = arith.constant 0 : index
    %41 = vector.load %arg2[%c5, %c0_13, %c0_14] : memref<9x16x64xf32, #tpu.memory_space<vmem>>, vector<1x16x64xf32>
    %42 = vector.shape_cast %41 : vector<1x16x64xf32> to vector<16x64xf32>
    %43 = vector.shape_cast %42 : vector<16x64xf32> to vector<1x16x64xf32>
    %44 = vector.broadcast %43 : vector<1x16x64xf32> to vector<2x16x64xf32>
    %45 = arith.mulf %40, %44 : vector<2x16x64xf32>
    %46 = arith.addf %39, %45 : vector<2x16x64xf32>
    %47 = vector.extract_strided_slice %3 {offsets = [0, 2, 0], sizes = [2, 16, 64], strides = [1, 1, 1]} : vector<2x24x64xf32> to vector<2x16x64xf32>
    %c6 = arith.constant 6 : index
    %c0_15 = arith.constant 0 : index
    %c0_16 = arith.constant 0 : index
    %48 = vector.load %arg2[%c6, %c0_15, %c0_16] : memref<9x16x64xf32, #tpu.memory_space<vmem>>, vector<1x16x64xf32>
    %49 = vector.shape_cast %48 : vector<1x16x64xf32> to vector<16x64xf32>
    %50 = vector.shape_cast %49 : vector<16x64xf32> to vector<1x16x64xf32>
    %51 = vector.broadcast %50 : vector<1x16x64xf32> to vector<2x16x64xf32>
    %52 = arith.mulf %47, %51 : vector<2x16x64xf32>
    %53 = arith.addf %46, %52 : vector<2x16x64xf32>
    %54 = vector.extract_strided_slice %4 {offsets = [0, 2, 0], sizes = [2, 16, 64], strides = [1, 1, 1]} : vector<2x24x64xf32> to vector<2x16x64xf32>
    %c7 = arith.constant 7 : index
    %c0_17 = arith.constant 0 : index
    %c0_18 = arith.constant 0 : index
    %55 = vector.load %arg2[%c7, %c0_17, %c0_18] : memref<9x16x64xf32, #tpu.memory_space<vmem>>, vector<1x16x64xf32>
    %56 = vector.shape_cast %55 : vector<1x16x64xf32> to vector<16x64xf32>
    %57 = vector.shape_cast %56 : vector<16x64xf32> to vector<1x16x64xf32>
    %58 = vector.broadcast %57 : vector<1x16x64xf32> to vector<2x16x64xf32>
    %59 = arith.mulf %54, %58 : vector<2x16x64xf32>
    %60 = arith.addf %53, %59 : vector<2x16x64xf32>
    %61 = vector.extract_strided_slice %5 {offsets = [0, 2, 0], sizes = [2, 16, 64], strides = [1, 1, 1]} : vector<2x24x64xf32> to vector<2x16x64xf32>
    %c8 = arith.constant 8 : index
    %c0_19 = arith.constant 0 : index
    %c0_20 = arith.constant 0 : index
    %62 = vector.load %arg2[%c8, %c0_19, %c0_20] : memref<9x16x64xf32, #tpu.memory_space<vmem>>, vector<1x16x64xf32>
    %63 = vector.shape_cast %62 : vector<1x16x64xf32> to vector<16x64xf32>
    %64 = vector.shape_cast %63 : vector<16x64xf32> to vector<1x16x64xf32>
    %65 = vector.broadcast %64 : vector<1x16x64xf32> to vector<2x16x64xf32>
    %66 = arith.mulf %61, %65 : vector<2x16x64xf32>
    %67 = arith.addf %60, %66 : vector<2x16x64xf32>
    %68 = vector.shape_cast %67 : vector<2x16x64xf32> to vector<32x64xf32>
    %c0_21 = arith.constant 0 : index
    %c0_22 = arith.constant 0 : index
    %69 = vector.load %arg3[%c0_21, %c0_22] : memref<64x128xf32, #tpu.memory_space<vmem>>, vector<64x128xf32>
    %cst_23 = arith.constant dense<0.000000e+00> : vector<32x128xf32>
    %70 = tpu.matmul %68, %69, %cst_23 {dimension_numbers = #tpu.dot_dimension_numbers<[1], [0], [0], [1], [0, 0, 1, 1], [], []>} : vector<32x64xf32>, vector<64x128xf32>, vector<32x128xf32> -> vector<32x128xf32>
    %c0_24 = arith.constant 0 : index
    %c0_25 = arith.constant 0 : index
    %71 = vector.load %arg4[%c0_24, %c0_25] : memref<1x128xf32, #tpu.memory_space<vmem>>, vector<1x128xf32>
    %72 = vector.broadcast %71 : vector<1x128xf32> to vector<32x128xf32>
    %73 = arith.addf %70, %72 : vector<32x128xf32>
    %74 = vector.shape_cast %73 : vector<32x128xf32> to vector<2x16x128xf32>
    %c0_26 = arith.constant 0 : index
    %c0_27 = arith.constant 0 : index
    %c0_28 = arith.constant 0 : index
    %75 = vector.load %arg5[%c0_26, %c0_27, %c0_28] : memref<2x16x128xf32, #tpu.memory_space<vmem>>, vector<2x16x128xf32>
    tpu.vector_store %arg5[%c0_26, %c0_27, %c0_28], %74 {strides = array<i32>} : memref<2x16x128xf32, #tpu.memory_space<vmem>>, vector<2x16x128xf32>,
    return
  }
  func.func @transform_0(%arg0: i32) -> (i32, i32, i32) {
    %c0_i32 = arith.constant 0 : i32
    %c0_i32_0 = arith.constant 0 : i32
    %c0_i32_1 = arith.constant 0 : i32
    return %arg0, %c0_i32, %c0_i32_0 : i32, i32, i32
  }
  func.func @transform_1(%arg0: i32) -> (i32, i32, i32) {
    %c0_i32 = arith.constant 0 : i32
    %c0_i32_0 = arith.constant 0 : i32
    %c0_i32_1 = arith.constant 0 : i32
    %c0_i32_2 = arith.constant 0 : i32
    return %c0_i32, %c0_i32_0, %c0_i32_1 : i32, i32, i32
  }
  func.func @transform_2(%arg0: i32) -> (i32, i32) {
    %c0_i32 = arith.constant 0 : i32
    %c0_i32_0 = arith.constant 0 : i32
    %c0_i32_1 = arith.constant 0 : i32
    return %c0_i32, %c0_i32_0 : i32, i32
  }
  func.func @transform_3(%arg0: i32) -> (i32, i32) {
    %c0_i32 = arith.constant 0 : i32
    %c0_i32_0 = arith.constant 0 : i32
    %c0_i32_1 = arith.constant 0 : i32
    return %c0_i32, %c0_i32_0 : i32, i32
  }
  func.func @transform_4(%arg0: i32) -> (i32, i32, i32) {
    %c0_i32 = arith.constant 0 : i32
    %c0_i32_0 = arith.constant 0 : i32
    %c0_i32_1 = arith.constant 0 : i32
    return %arg0, %c0_i32, %c0_i32_0 : i32, i32, i32
  }
}

</mosaic_0001>

<llo_original>
// kernel: tile.18
$region0: #{tile.18}
  #allocation0 [shape = 's32[1]{0}', space=sflag, size = 0x4, scoped, tag = 'scoped memory for tile.18']
  %s0 = inlined_call_operand.vmem [shape: f32[8], index: 0, kind: input, shape index: {}]
  %s1 = inlined_call_operand.vmem [shape: f32[16,8], index: 1, kind: output, shape index: {}]
  // Predicated region
  $region2: #{tile.18} parent=0 // pred_check
    _
  $region3: #{tile.18} parent=0 // pred_check_branch
    %3 = sbr.rel (0) target = $region5
  $region4: #{tile.18} parent=0 // pred_region
    _
  $region5: #{tile.18} parent=0 // pred_fallthru
    _
  %v4 = vld [vmem:[%s0] ss:$0 sm:$0xff]
  %5 = vst [vmem:[%s1] sm:$0xff] %v4
  %s6 = scalar_lea.vmem %s1, 8
  %7 = vst [vmem:[%s6] sm:$0xff] %v4

// kernel: tile.19
$region0: #{tile.19}
  %s0 = inlined_call_operand.vmem [shape: f32[16,8], index: 0, kind: input, shape index: {}]
  %s1 = inlined_call_operand.vmem [shape: f32[1,128], index: 1, kind: output, shape index: {}]
  $region1: #{tile.19} parent=0
    #allocation0 [shape = 'u8[4096]{0}', space=vmem, size = 0x1000, scoped, tag = 'scoped mem for output reshape']
    %v2 = vld [vmem:[%s0] sm:$0x1]
    %vm3 = vcmask 64512
    %4 = vst.msk [vmem:[#allocation0] sm:$0x1] %vm3, %v2
    %s5 = scalar_lea.vmem %s0, 15
    %v6 = vld [vmem:[%s5] sm:$0x1]
    %7 = vrot.lane.b32.xlu0 %v6, 120
    %v8 = vpop.permute.xlu0 %7
    %vm9 = vcmask 1048512
    %10 = vst.msk [vmem:[#allocation0] sm:$0x1] %vm9, %v8
    %s11 = scalar_lea.vmem %s0, 14
    %v12 = vld [vmem:[%s11] sm:$0x1]
    %13 = vrot.lane.b32.xlu0 %v12, 112
    %v14 = vpop.permute.xlu0 %13
    %vm15 = vcmask 982912
    %16 = vst.msk [vmem:[#allocation0] sm:$0x1] %vm15, %v14
    %s17 = scalar_lea.vmem %s0, 13
    %v18 = vld [vmem:[%s17] sm:$0x1]
    %19 = vrot.lane.b32.xlu0 %v18, 104
    %v20 = vpop.permute.xlu0 %19
    %vm21 = vcmask 917312
    %22 = vst.msk [vmem:[#allocation0] sm:$0x1] %vm21, %v20
    %s23 = scalar_lea.vmem %s0, 12
    %v24 = vld [vmem:[%s23] sm:$0x1]
    %25 = vrot.lane.b32.xlu0 %v24, 96
    %v26 = vpop.permute.xlu0 %25
    %vm27 = vcmask 851712
    %28 = vst.msk [vmem:[#allocation0] sm:$0x1] %vm27, %v26
    %s29 = scalar_lea.vmem %s0, 11
    %v30 = vld [vmem:[%s29] sm:$0x1]
    %31 = vrot.lane.b32.xlu0 %v30, 88
    %v32 = vpop.permute.xlu0 %31
    %vm33 = vcmask 786112
    %34 = vst.msk [vmem:[#allocation0] sm:$0x1] %vm33, %v32
    %s35 = scalar_lea.vmem %s0, 10
    %v36 = vld [vmem:[%s35] sm:$0x1]
    %37 = vrot.lane.b32.xlu0 %v36, 80
    %v38 = vpop.permute.xlu0 %37
    %vm39 = vcmask 720512
    %40 = vst.msk [vmem:[#allocation0] sm:$0x1] %vm39, %v38
    %s41 = scalar_lea.vmem %s0, 9
    %v42 = vld [vmem:[%s41] sm:$0x1]
    %43 = vrot.lane.b32.xlu0 %v42, 72
    %v44 = vpop.permute.xlu0 %43
    %vm45 = vcmask 654912
    %46 = vst.msk [vmem:[#allocation0] sm:$0x1] %vm45, %v44
    %s47 = scalar_lea.vmem %s0, 8
    %v48 = vld [vmem:[%s47] sm:$0x1]
    %49 = vrot.lane.b32.xlu0 %v48, 64
    %v50 = vpop.permute.xlu0 %49
    %vm51 = vcmask 589312
    %52 = vst.msk [vmem:[#allocation0] sm:$0x1] %vm51, %v50
    %s53 = scalar_lea.vmem %s0, 7
    %v54 = vld [vmem:[%s53] sm:$0x1]
    %55 = vrot.lane.b32.xlu0 %v54, 56
    %v56 = vpop.permute.xlu0 %55
    %vm57 = vcmask 523712
    %58 = vst.msk [vmem:[#allocation0] sm:$0x1] %vm57, %v56
    %s59 = scalar_lea.vmem %s0, 6
    %v60 = vld [vmem:[%s59] sm:$0x1]
    %61 = vrot.lane.b32.xlu0 %v60, 48
    %v62 = vpop.permute.xlu0 %61
    %vm63 = vcmask 458112
    %64 = vst.msk [vmem:[#allocation0] sm:$0x1] %vm63, %v62
    %s65 = scalar_lea.vmem %s0, 5
    %v66 = vld [vmem:[%s65] sm:$0x1]
    %67 = vrot.lane.b32.xlu0 %v66, 40
    %v68 = vpop.permute.xlu0 %67
    %vm69 = vcmask 392512
    %70 = vst.msk [vmem:[#allocation0] sm:$0x1] %vm69, %v68
    %s71 = scalar_lea.vmem %s0, 4
    %v72 = vld [vmem:[%s71] sm:$0x1]
    %73 = vrot.lane.b32.xlu0 %v72, 32
    %v74 = vpop.permute.xlu0 %73
    %vm75 = vcmask 326912
    %76 = vst.msk [vmem:[#allocation0] sm:$0x1] %vm75, %v74
    %s77 = scalar_lea.vmem %s0, 3
    %v78 = vld [vmem:[%s77] sm:$0x1]
    %79 = vrot.lane.b32.xlu0 %v78, 24
    %v80 = vpop.permute.xlu0 %79
    %vm81 = vcmask 261312
    %82 = vst.msk [vmem:[#allocation0] sm:$0x1] %vm81, %v80
    %s83 = scalar_lea.vmem %s0, 2
    %v84 = vld [vmem:[%s83] sm:$0x1]
    %85 = vrot.lane.b32.xlu0 %v84, 16
    %v86 = vpop.permute.xlu0 %85
    %vm87 = vcmask 195712
    %88 = vst.msk [vmem:[#allocation0] sm:$0x1] %vm87, %v86
    %s89 = scalar_lea.vmem %s0, 1
    %v90 = vld [vmem:[%s89] sm:$0x1]
    %91 = vrot.lane.b32.xlu0 %v90, 8
    %v92 = vpop.permute.xlu0 %91
    %vm93 = vcmask 130112
    %94 = vst.msk [vmem:[#allocation0] sm:$0x1] %vm93, %v92
    %s96 = sshllo.u32 0, 1
    %v98 = vld [vmem:[#allocation0] sm:%s96]
    %s99 = sshllo.u32 0, 1
    %100 = vst [vmem:[%s1] sm:%s99] %v98

// kernel: separable_conv2d_pallas.1
$region0: #{separable_conv2d_pallas.1}
  #allocation0 [shape = 'u32[]', space=smem, size = 0x4, offset = 0x4, fixed_abs, tag = 'smem constant byte address 0x4 - core index']
  #allocation1 [shape = 'u32[144,128]{1,0:T(1,128)}', space=vmem, size = 0x12000, scoped, tag = 'internal scratch']
  %s0 = inlined_call_operand.vmem [shape: f32[2,24,128], index: 0, kind: input, shape index: {}]
  %s1 = inlined_call_operand.vmem [shape: f32[9,16,64], index: 1, kind: input, shape index: {}]
  %s2 = inlined_call_operand.vmem [shape: f32[64,128], index: 2, kind: input, shape index: {}]
  %s3 = inlined_call_operand.vmem [shape: f32[1,128], index: 3, kind: input, shape index: {}]
  %s4 = inlined_call_operand.vmem [shape: f32[2,16,128], index: 4, kind: output, shape index: {}]
  %s5 = sld [smem:[#allocation0]]
  $region26: #{separable_conv2d_pallas.1} parent=0
    _
  %s7 = ssub.s32 1, %s5
  %s8 = scalar_select 0, %s7, %s5
  // Predicated region
  $region2: #{separable_conv2d_pallas.1} parent=0 // pred_check
    _
  $region3: #{separable_conv2d_pallas.1} parent=0 // pred_check_branch
    %10 = sbr.rel (0) target = $region5
  $region4: #{separable_conv2d_pallas.1} parent=0 // pred_region
    _
  $region5: #{separable_conv2d_pallas.1} parent=0 // pred_fallthru
    _
  // Predicated region
  $region6: #{separable_conv2d_pallas.1} parent=0 // pred_check
    _
  $region7: #{separable_conv2d_pallas.1} parent=0 // pred_check_branch
    %12 = sbr.rel (0) target = $region9
  $region8: #{separable_conv2d_pallas.1} parent=0 // pred_region
    _
  $region9: #{separable_conv2d_pallas.1} parent=0 // pred_fallthru
    _
  // Predicated region
  $region10: #{separable_conv2d_pallas.1} parent=0 // pred_check
    _
  $region11: #{separable_conv2d_pallas.1} parent=0 // pred_check_branch
    %14 = sbr.rel (0) target = $region13
  $region12: #{separable_conv2d_pallas.1} parent=0 // pred_region
    _
  $region13: #{separable_conv2d_pallas.1} parent=0 // pred_fallthru
    _
  // Predicated region
  $region14: #{separable_conv2d_pallas.1} parent=0 // pred_check
    _
  $region15: #{separable_conv2d_pallas.1} parent=0 // pred_check_branch
    %16 = sbr.rel (0) target = $region17
  $region16: #{separable_conv2d_pallas.1} parent=0 // pred_region
    _
  $region17: #{separable_conv2d_pallas.1} parent=0 // pred_fallthru
    _
  %v17 = vld [vmem:[%s0] sm:$0xff]
  %v18 = vld [vmem:[%s0 + $0x8] sm:$0xff]
  %v19 = vld [vmem:[%s0 + $0x10] sm:$0xff]
  %v20 = vld [vmem:[%s0 + $0x18] sm:$0xff]
  %v21 = vld [vmem:[%s0 + $0x20] sm:$0xff]
  %v22 = vld [vmem:[%s0 + $0x28] sm:$0xff]
  %v23 = vmax.f32 %v17, 0.0
  %v24 = vmax.f32 %v18, 0.0
  %v25 = vmax.f32 %v19, 0.0
  %v26 = vmax.f32 %v20, 0.0
  %v27 = vmax.f32 %v21, 0.0
  %v28 = vmax.f32 %v22, 0.0
  %v29 = vld [vmem:[%s1] sm:$0xff]
  %v30 = vld [vmem:[%s1 + $0x8] sm:$0xff]
  %v31 = vmul.f32 %v23, %v29
  %v32 = vmul.f32 %v24, %v30
  %v33 = vmul.f32 %v26, %v29
  %v34 = vmul.f32 %v27, %v30
  %s35 = scalar_lea.vmem %s1, 16
  %v36 = vld [vmem:[%s35] sm:$0xff]
  %v37 = vld [vmem:[%s35 + $0x8] sm:$0xff]
  %40 = vrot.lane.b32.xlu0 %v36, 4
  %v41 = vpop.permute.xlu0 %40
  %42 = vrot.lane.b32.xlu0 %v37, 4
  %v43 = vpop.permute.xlu0 %42
  %v46 = vmul.f32 %v23, %v41
  %v47 = vmul.f32 %v24, %v43
  %v48 = vmul.f32 %v26, %v41
  %v49 = vmul.f32 %v27, %v43
  %54 = vrot.lane.b32.xlu0 %v46, 124
  %v55 = vpop.permute.xlu0 %54
  %56 = vrot.lane.b32.xlu0 %v47, 124
  %v57 = vpop.permute.xlu0 %56
  %58 = vrot.lane.b32.xlu0 %v48, 124
  %v59 = vpop.permute.xlu0 %58
  %60 = vrot.lane.b32.xlu0 %v49, 124
  %v61 = vpop.permute.xlu0 %60
  %v66 = vadd.f32 %v31, %v55
  %v67 = vadd.f32 %v32, %v57
  %v68 = vadd.f32 %v33, %v59
  %v69 = vadd.f32 %v34, %v61
  %s70 = scalar_lea.vmem %s1, 32
  %v71 = vld [vmem:[%s70] sm:$0xff]
  %v72 = vld [vmem:[%s70 + $0x8] sm:$0xff]
  %75 = vrot.lane.b32.xlu0 %v71, 8
  %v76 = vpop.permute.xlu0 %75
  %77 = vrot.lane.b32.xlu0 %v72, 8
  %v78 = vpop.permute.xlu0 %77
  %v81 = vmul.f32 %v23, %v76
  %v82 = vmul.f32 %v24, %v78
  %v83 = vmul.f32 %v26, %v76
  %v84 = vmul.f32 %v27, %v78
  %89 = vrot.lane.b32.xlu0 %v81, 120
  %v90 = vpop.permute.xlu0 %89
  %91 = vrot.lane.b32.xlu0 %v82, 120
  %v92 = vpop.permute.xlu0 %91
  %93 = vrot.lane.b32.xlu0 %v83, 120
  %v94 = vpop.permute.xlu0 %93
  %95 = vrot.lane.b32.xlu0 %v84, 120
  %v96 = vpop.permute.xlu0 %95
  %v101 = vadd.f32 %v66, %v90
  %v102 = vadd.f32 %v67, %v92
  %v103 = vadd.f32 %v68, %v94
  %v104 = vadd.f32 %v69, %v96
  %s105 = scalar_lea.vmem %s1, 48
  %v106 = vld [vmem:[%s105] sm:$0xff]
  %v107 = vld [vmem:[%s105 + $0x8] sm:$0xff]
  %vm110 = vcmask 1040384
  %v111 = vrot.slane %v106, 7
  %v112 = vrot.slane %v107, 7
  %v113 = vsel %vm110, %v111, %v112
  %v117 = vmul.f32 %v23, %v111
  %v118 = vmul.f32 %v24, %v113
  %v119 = vmul.f32 %v25, %v112
  %v120 = vmul.f32 %v26, %v111
  %v121 = vmul.f32 %v27, %v113
  %v122 = vmul.f32 %v28, %v112
  %vm129 = vcmask 1046528
  %v130 = vrot.slane %v117, 1
  %v131 = vrot.slane %v118, 1
  %v132 = vsel %vm129, %v130, %v131
  %v133 = vrot.slane %v119, 1
  %v134 = vsel %vm129, %v131, %v133
  %v135 = vrot.slane %v120, 1
  %v136 = vrot.slane %v121, 1
  %v137 = vsel %vm129, %v135, %v136
  %v138 = vrot.slane %v122, 1
  %v139 = vsel %vm129, %v136, %v138
  %v144 = vadd.f32 %v101, %v132
  %v145 = vadd.f32 %v102, %v134
  %v146 = vadd.f32 %v103, %v137
  %v147 = vadd.f32 %v104, %v139
  %s148 = scalar_lea.vmem %s1, 64
  %v149 = vld [vmem:[%s148] sm:$0xff]
  %v150 = vld [vmem:[%s148 + $0x8] sm:$0xff]
  %v153 = vrot.slane %v149, 7
  %v154 = vrot.slane %v150, 7
  %v155 = vsel %vm110, %v153, %v154
  %156 = vrot.lane.b32.xlu0 %v153, 4
  %v157 = vpop.permute.xlu0 %156
  %158 = vrot.lane.b32.xlu0 %v155, 4
  %v159 = vpop.permute.xlu0 %158
  %160 = vrot.lane.b32.xlu0 %v154, 4
  %v161 = vpop.permute.xlu0 %160
  %v165 = vmul.f32 %v23, %v157
  %v166 = vmul.f32 %v24, %v159
  %v167 = vmul.f32 %v25, %v161
  %v168 = vmul.f32 %v26, %v157
  %v169 = vmul.f32 %v27, %v159
  %v170 = vmul.f32 %v28, %v161
  %v177 = vrot.slane %v165, 1
  %v178 = vrot.slane %v166, 1
  %v179 = vsel %vm129, %v177, %v178
  %v180 = vrot.slane %v167, 1
  %v181 = vsel %vm129, %v178, %v180
  %v182 = vrot.slane %v168, 1
  %v183 = vrot.slane %v169, 1
  %v184 = vsel %vm129, %v182, %v183
  %v185 = vrot.slane %v170, 1
  %v186 = vsel %vm129, %v183, %v185
  %187 = vrot.lane.b32.xlu0 %v179, 124
  %v188 = vpop.permute.xlu0 %187
  %189 = vrot.lane.b32.xlu0 %v181, 124
  %v190 = vpop.permute.xlu0 %189
  %191 = vrot.lane.b32.xlu0 %v184, 124
  %v192 = vpop.permute.xlu0 %191
  %193 = vrot.lane.b32.xlu0 %v186, 124
  %v194 = vpop.permute.xlu0 %193
  %v199 = vadd.f32 %v144, %v188
  %v200 = vadd.f32 %v145, %v190
  %v201 = vadd.f32 %v146, %v192
  %v202 = vadd.f32 %v147, %v194
  %s203 = scalar_lea.vmem %s1, 80
  %v204 = vld [vmem:[%s203] sm:$0xff]
  %v205 = vld [vmem:[%s203 + $0x8] sm:$0xff]
  %v208 = vrot.slane %v204, 7
  %v209 = vrot.slane %v205, 7
  %v210 = vsel %vm110, %v208, %v209
  %211 = vrot.lane.b32.xlu0 %v208, 8
  %v212 = vpop.permute.xlu0 %211
  %213 = vrot.lane.b32.xlu0 %v210, 8
  %v214 = vpop.permute.xlu0 %213
  %215 = vrot.lane.b32.xlu0 %v209, 8
  %v216 = vpop.permute.xlu0 %215
  %v220 = vmul.f32 %v23, %v212
  %v221 = vmul.f32 %v24, %v214
  %v222 = vmul.f32 %v25, %v216
  %v223 = vmul.f32 %v26, %v212
  %v224 = vmul.f32 %v27, %v214
  %v225 = vmul.f32 %v28, %v216
  %v232 = vrot.slane %v220, 1
  %v233 = vrot.slane %v221, 1
  %v234 = vsel %vm129, %v232, %v233
  %v235 = vrot.slane %v222, 1
  %v236 = vsel %vm129, %v233, %v235
  %v237 = vrot.slane %v223, 1
  %v238 = vrot.slane %v224, 1
  %v239 = vsel %vm129, %v237, %v238
  %v240 = vrot.slane %v225, 1
  %v241 = vsel %vm129, %v238, %v240
  %242 = vrot.lane.b32.xlu0 %v234, 120
  %v243 = vpop.permute.xlu0 %242
  %244 = vrot.lane.b32.xlu0 %v236, 120
  %v245 = vpop.permute.xlu0 %244
  %246 = vrot.lane.b32.xlu0 %v239, 120
  %v247 = vpop.permute.xlu0 %246
  %248 = vrot.lane.b32.xlu0 %v241, 120
  %v249 = vpop.permute.xlu0 %248
  %v254 = vadd.f32 %v199, %v243
  %v255 = vadd.f32 %v200, %v245
  %v256 = vadd.f32 %v201, %v247
  %v257 = vadd.f32 %v202, %v249
  %s258 = scalar_lea.vmem %s1, 96
  %v259 = vld [vmem:[%s258] sm:$0xff]
  %v260 = vld [vmem:[%s258 + $0x8] sm:$0xff]
  %vm263 = vcmask 1041408
  %v264 = vrot.slane %v259, 6
  %v265 = vrot.slane %v260, 6
  %v266 = vsel %vm263, %v264, %v265
  %v270 = vmul.f32 %v23, %v264
  %v271 = vmul.f32 %v24, %v266
  %v272 = vmul.f32 %v25, %v265
  %v273 = vmul.f32 %v26, %v264
  %v274 = vmul.f32 %v27, %v266
  %v275 = vmul.f32 %v28, %v265
  %vm282 = vcmask 1045504
  %v283 = vrot.slane %v270, 2
  %v284 = vrot.slane %v271, 2
  %v285 = vsel %vm282, %v283, %v284
  %v286 = vrot.slane %v272, 2
  %v287 = vsel %vm282, %v284, %v286
  %v288 = vrot.slane %v273, 2
  %v289 = vrot.slane %v274, 2
  %v290 = vsel %vm282, %v288, %v289
  %v291 = vrot.slane %v275, 2
  %v292 = vsel %vm282, %v289, %v291
  %v297 = vadd.f32 %v254, %v285
  %v298 = vadd.f32 %v255, %v287
  %v299 = vadd.f32 %v256, %v290
  %v300 = vadd.f32 %v257, %v292
  %s301 = scalar_lea.vmem %s1, 112
  %v302 = vld [vmem:[%s301] sm:$0xff]
  %v303 = vld [vmem:[%s301 + $0x8] sm:$0xff]
  %v306 = vrot.slane %v302, 6
  %v307 = vrot.slane %v303, 6
  %v308 = vsel %vm263, %v306, %v307
  %309 = vrot.lane.b32.xlu0 %v306, 4
  %v310 = vpop.permute.xlu0 %309
  %311 = vrot.lane.b32.xlu0 %v308, 4
  %v312 = vpop.permute.xlu0 %311
  %313 = vrot.lane.b32.xlu0 %v307, 4
  %v314 = vpop.permute.xlu0 %313
  %v318 = vmul.f32 %v23, %v310
  %v319 = vmul.f32 %v24, %v312
  %v320 = vmul.f32 %v25, %v314
  %v321 = vmul.f32 %v26, %v310
  %v322 = vmul.f32 %v27, %v312
  %v323 = vmul.f32 %v28, %v314
  %v330 = vrot.slane %v318, 2
  %v331 = vrot.slane %v319, 2
  %v332 = vsel %vm282, %v330, %v331
  %v333 = vrot.slane %v320, 2
  %v334 = vsel %vm282, %v331, %v333
  %v335 = vrot.slane %v321, 2
  %v336 = vrot.slane %v322, 2
  %v337 = vsel %vm282, %v335, %v336
  %v338 = vrot.slane %v323, 2
  %v339 = vsel %vm282, %v336, %v338
  %340 = vrot.lane.b32.xlu0 %v332, 124
  %v341 = vpop.permute.xlu0 %340
  %342 = vrot.lane.b32.xlu0 %v334, 124
  %v343 = vpop.permute.xlu0 %342
  %344 = vrot.lane.b32.xlu0 %v337, 124
  %v345 = vpop.permute.xlu0 %344
  %346 = vrot.lane.b32.xlu0 %v339, 124
  %v347 = vpop.permute.xlu0 %346
  %v352 = vadd.f32 %v297, %v341
  %v353 = vadd.f32 %v298, %v343
  %v354 = vadd.f32 %v299, %v345
  %v355 = vadd.f32 %v300, %v347
  %s356 = scalar_lea.vmem %s1, 128
  %v357 = vld [vmem:[%s356] sm:$0xff]
  %v358 = vld [vmem:[%s356 + $0x8] sm:$0xff]
  %v361 = vrot.slane %v357, 6
  %v362 = vrot.slane %v358, 6
  %v363 = vsel %vm263, %v361, %v362
  %364 = vrot.lane.b32.xlu0 %v361, 8
  %v365 = vpop.permute.xlu0 %364
  %366 = vrot.lane.b32.xlu0 %v363, 8
  %v367 = vpop.permute.xlu0 %366
  %368 = vrot.lane.b32.xlu0 %v362, 8
  %v369 = vpop.permute.xlu0 %368
  %v373 = vmul.f32 %v23, %v365
  %v374 = vmul.f32 %v24, %v367
  %v375 = vmul.f32 %v25, %v369
  %v376 = vmul.f32 %v26, %v365
  %v377 = vmul.f32 %v27, %v367
  %v378 = vmul.f32 %v28, %v369
  %v385 = vrot.slane %v373, 2
  %v386 = vrot.slane %v374, 2
  %v387 = vsel %vm282, %v385, %v386
  %v388 = vrot.slane %v375, 2
  %v389 = vsel %vm282, %v386, %v388
  %v390 = vrot.slane %v376, 2
  %v391 = vrot.slane %v377, 2
  %v392 = vsel %vm282, %v390, %v391
  %v393 = vrot.slane %v378, 2
  %v394 = vsel %vm282, %v391, %v393
  %395 = vrot.lane.b32.xlu0 %v387, 120
  %v396 = vpop.permute.xlu0 %395
  %397 = vrot.lane.b32.xlu0 %v389, 120
  %v398 = vpop.permute.xlu0 %397
  %399 = vrot.lane.b32.xlu0 %v392, 120
  %v400 = vpop.permute.xlu0 %399
  %401 = vrot.lane.b32.xlu0 %v394, 120
  %v402 = vpop.permute.xlu0 %401
  %v407 = vadd.f32 %v352, %v396
  %v408 = vadd.f32 %v353, %v398
  %v409 = vadd.f32 %v354, %v400
  %v410 = vadd.f32 %v355, %v402
  %v411 = vld [vmem:[%s2] sm:$0xff]
  %v412 = vld [vmem:[%s2 + $0x8] sm:$0xff]
  %v413 = vld [vmem:[%s2 + $0x10] sm:$0xff]
  %v414 = vld [vmem:[%s2 + $0x18] sm:$0xff]
  %v415 = vld [vmem:[%s2 + $0x20] sm:$0xff]
  %v416 = vld [vmem:[%s2 + $0x28] sm:$0xff]
  %v417 = vld [vmem:[%s2 + $0x30] sm:$0xff]
  %v418 = vld [vmem:[%s2 + $0x38] sm:$0xff]
  %v419 = vld [vmem:[%s3] sm:$0x1]
  %v421 = vlaneseq
  %v422 = vshrl.u32 %v421, 7
  %v423 = vsub.s32 0, %v422
  %v424 = vrot.slane %v419, %v423
  %vm426 = vcmask 523264
  %v428 = vsel %vm426, %v407, 0
  %v431 = vsel %vm426, %v408, 0
  %v434 = vsel %vm426, %v409, 0
  %v437 = vsel %vm426, %v410, 0
  %439 = vmatprep.subr.mxu0 0.0
  %440 = vmatpush1.msra.mxu0 %v411
  %441 = vmatprep.subr.mxu0 0.0
  %442 = vmatpush1.msra.mxu0 %v412
  %443 = vmatprep.subr.mxu0 0.0
  %444 = vmatpush1.msra.mxu0 %v413
  %445 = vmatprep.subr.mxu0 0.0
  %446 = vmatpush1.msra.mxu0 %v414
  %447 = vmatprep.subr.mxu0 0.0
  %448 = vmatpush1.msra.mxu0 %v415
  %449 = vmatprep.subr.mxu0 0.0
  %450 = vmatpush1.msra.mxu0 %v416
  %451 = vmatprep.subr.mxu0 0.0
  %452 = vmatpush1.msra.mxu0 %v417
  %453 = vmatprep.subr.mxu0 0.0
  %454 = vmatpush1.msra.mxu0 %v418
  %455 = vmatprep.subr.mxu0 0.0
  %456 = vmatpush1.msra.mxu0 0.0
  %457 = vmatprep.subr.mxu0 0.0
  %458 = vmatpush1.msra.mxu0 0.0
  %459 = vmatprep.subr.mxu0 0.0
  %460 = vmatpush1.msra.mxu0 0.0
  %461 = vmatprep.subr.mxu0 0.0
  %462 = vmatpush1.msra.mxu0 0.0
  %463 = vmatprep.subr.mxu0 0.0
  %464 = vmatpush1.msra.mxu0 0.0
  %465 = vmatprep.subr.mxu0 0.0
  %466 = vmatpush1.msra.mxu0 0.0
  %467 = vmatprep.subr.mxu0 0.0
  %468 = vmatpush1.msra.mxu0 0.0
  %469 = vmatprep.subr.mxu0 0.0
  %470 = vmatpush1.msra.mxu0 0.0
  %471 = vmatprep.subr.mxu0 0.0
  %472 = vmatpush1.msra.mxu0 0.0
  %473 = vmatprep.subr.mxu0 0.0
  %474 = vmatpush1.msra.mxu0 0.0
  %475 = vmatprep.subr.mxu0 0.0
  %476 = vmatpush1.msra.mxu0 0.0
  %477 = vmatprep.subr.mxu0 0.0
  %478 = vmatpush1.msra.mxu0 0.0
  %479 = vmatprep.subr.mxu0 0.0
  %480 = vmatpush1.msra.mxu0 0.0
  %481 = vmatprep.subr.mxu0 0.0
  %482 = vmatpush1.msra.mxu0 0.0
  %483 = vmatprep.subr.mxu0 0.0
  %484 = vmatpush1.msra.mxu0 0.0
  %485 = vmatprep.subr.mxu0 0.0
  %486 = vmatpush1.msra.mxu0 0.0
  %487 = vmatprep.subr.mxu0 0.0
  %488 = vmatpush1.msra.mxu0 0.0
  %489 = vmatprep.subr.mxu0 0.0
  %490 = vmatpush1.msra.mxu0 0.0
  %491 = vmatprep.subr.mxu0 0.0
  %492 = vmatpush1.msra.mxu0 0.0
  %493 = vmatprep.subr.mxu0 0.0
  %494 = vmatpush1.msra.mxu0 0.0
  %495 = vmatprep.subr.mxu0 0.0
  %496 = vmatpush1.msra.mxu0 0.0
  %497 = vmatprep.subr.mxu0 0.0
  %498 = vmatpush1.msra.mxu0 0.0
  %499 = vmatprep.subr.mxu0 0.0
  %500 = vmatpush1.msra.mxu0 0.0
  %501 = vmatprep.subr.mxu0 0.0
  %502 = vmatpush1.msra.mxu0 0.0
  %503 = vmatprep.mubr.f32.mxu0 0.0
  %504 = vmatmul.mubr.f32.gmra.mrb[0].mxu0 %v428
  %v505 = vpop.f32.mrb[0].mxu0
  %v506 = vadd.f32 %v424, %v505
  %v507 = vpop.f32.mrb[0].mxu0
  %508 = vmatprep.mubr.f32.mxu0 0.0
  %509 = vmatmul.mubr.f32.gmra.mrb[0].mxu0 %v431
  %v510 = vpop.f32.mrb[0].mxu0
  %v511 = vadd.f32 %v424, %v510
  %v512 = vpop.f32.mrb[0].mxu0
  %513 = vmatprep.mubr.f32.mxu0 0.0
  %514 = vmatmul.mubr.f32.gmra.mrb[0].mxu0 %v434
  %v515 = vpop.f32.mrb[0].mxu0
  %v516 = vadd.f32 %v424, %v515
  %v517 = vpop.f32.mrb[0].mxu0
  %518 = vmatprep.mubr.f32.mxu0 0.0
  %519 = vmatmul.mubr.f32.gmra.mrb[0].mxu0 %v437
  %v520 = vpop.f32.mrb[0].mxu0
  %v521 = vadd.f32 %v424, %v520
  %v522 = vpop.f32.mrb[0].mxu0
  %523 = vdwg.mxu0
  %524 = vst [vmem:[%s4] sm:$0xff] %v506
  %525 = vst [vmem:[%s4 + $0x8] sm:$0xff] %v511
  %526 = vst [vmem:[%s4 + $0x10] sm:$0xff] %v516
  %527 = vst [vmem:[%s4 + $0x18] sm:$0xff] %v521
  // Predicated region
  $region18: #{separable_conv2d_pallas.1} parent=0 // pred_check
    _
  $region19: #{separable_conv2d_pallas.1} parent=0 // pred_check_branch
    %529 = sbr.rel (0) target = $region21
  $region20: #{separable_conv2d_pallas.1} parent=0 // pred_region
    _
  $region21: #{separable_conv2d_pallas.1} parent=0 // pred_fallthru
    _
  // Predicated region
  $region22: #{separable_conv2d_pallas.1} parent=0 // pred_check
    _
  $region23: #{separable_conv2d_pallas.1} parent=0 // pred_check_branch
    %531 = sbr.rel (0) target = $region25
  $region24: #{separable_conv2d_pallas.1} parent=0 // pred_region
    _
  $region25: #{separable_conv2d_pallas.1} parent=0 // pred_fallthru
    _

</llo_original>
